<compile_context>
chip_gen: v6e
topology: v6e:2x2x1
jax: 0.10.0
libtpu: 0.0.40
codegen_flags: <defaults>
</compile_context>

<pallas_src>
import functools
import math

import jax
import jax.numpy as jnp
from jax.experimental import pallas as pl
from jax.experimental.pallas import tpu as pltpu

LN_EPS = 1e-5
NEG_MASK = float(-2 ** 15 + 1)


# ----------------------------------------------------------------------------
# helpers
# ----------------------------------------------------------------------------
def _round_up(v, m):
    return (v + m - 1) // m * m


def _tile_rows(m, tm_max=512):
    """Pick (padded_M, row_tile).  Whole problem in one step when it fits."""
    mp = _round_up(m, 8)
    if mp <= tm_max:
        return mp, mp
    return _round_up(mp, tm_max), tm_max


def _pad_rows(a, mp):
    m = a.shape[1]
    if m == mp:
        return a
    return jnp.pad(a, ((0, 0), (0, mp - m), (0, 0)))


def _layernorm(y):
    mu = jnp.mean(y, axis=-1, keepdims=True)
    var = jnp.mean(jnp.square(y - mu), axis=-1, keepdims=True)
    return (y - mu) * jax.lax.rsqrt(var + LN_EPS)


# ----------------------------------------------------------------------------
# Pallas kernels
# ----------------------------------------------------------------------------
def _group_linear_kernel(x_ref, w_ref, b_ref, o_ref, *, relu):
    x = x_ref[0]                                              # (tm, Fin)
    y = jnp.dot(x, w_ref[0], preferred_element_type=jnp.float32) + b_ref[0]
    if relu:
        y = jnp.maximum(y, 0.0)
    o_ref[0] = y.astype(o_ref.dtype)


def _group_linear_res_ln_kernel(x_ref, w_ref, b_ref, r_ref, o_ref):
    x = x_ref[0]
    y = jnp.dot(x, w_ref[0], preferred_element_type=jnp.float32) + b_ref[0]
    y = y + r_ref[0]
    o_ref[0] = _layernorm(y).astype(o_ref.dtype)


def _group_ffn2_kernel(x_ref, w1_ref, b1_ref, w2_ref, b2_ref, o_ref, *, res_ln):
    x = x_ref[0]                                              # (tm, F0)
    h = jnp.dot(x, w1_ref[0], preferred_element_type=jnp.float32) + b1_ref[0]
    h = jnp.maximum(h, 0.0)
    y = jnp.dot(h, w2_ref[0], preferred_element_type=jnp.float32) + b2_ref[0]
    if res_ln:
        y = y + x[:, : y.shape[-1]]
        y = _layernorm(y)
    o_ref[0] = y.astype(o_ref.dtype)


# ----------------------------------------------------------------------------
# Pallas wrappers (group-fused: leading G axis = independent problems)
# ----------------------------------------------------------------------------
def group_linear(x, w, b, *, relu=False, residual=None, tm_max=512):
    """x: [G,M,Fin], w: [G,Fin,Fout], b: [G,Fout] -> [G,M,Fout].

    residual (if given): [G,M,Fout]; result is LayerNorm(x@w+b+residual)."""
    G, M, Fin = x.shape
    Fout = w.shape[-1]

    # K padding (zero rows) so tiny feature counts stay tile-friendly.
    fin_p = _round_up(Fin, 8)
    if fin_p != Fin:
        x = jnp.pad(x, ((0, 0), (0, 0), (0, fin_p - Fin)))
        w = jnp.pad(w, ((0, 0), (0, fin_p - Fin), (0, 0)))
        Fin = fin_p

    Mp, tm = _tile_rows(M, tm_max)
    x = _pad_rows(x, Mp)
    inputs = [x, w, b.reshape(G, 1, Fout)]
    in_specs = [
        pl.BlockSpec((1, tm, Fin), lambda g, i: (g, i, 0)),
        pl.BlockSpec((1, Fin, Fout), lambda g, i: (g, 0, 0)),
        pl.BlockSpec((1, 1, Fout), lambda g, i: (g, 0, 0)),
    ]
    if residual is not None:
        inputs.append(_pad_rows(residual, Mp))
        in_specs.append(pl.BlockSpec((1, tm, Fout), lambda g, i: (g, i, 0)))
        kernel = _group_linear_res_ln_kernel
    else:
        kernel = functools.partial(_group_linear_kernel, relu=relu)

    out = pl.pallas_call(
        kernel,
        out_shape=jax.ShapeDtypeStruct((G, Mp, Fout), jnp.float32),
        grid_spec=pltpu.PrefetchScalarGridSpec(
            num_scalar_prefetch=0,
            grid=(G, Mp // tm),
            in_specs=in_specs,
            out_specs=pl.BlockSpec((1, tm, Fout), lambda g, i: (g, i, 0)),
        ),
        compiler_params=pltpu.CompilerParams(
            dimension_semantics=("parallel", "parallel")),
    )(*inputs)
    return out[:, :M, :]


def group_ffn2(x, w1, b1, w2, b2, *, res_ln=False, tm_max=512):
    """x: [G,M,F0]; w1: [G,F0,F1]; w2: [G,F1,F2] -> [G,M,F2].

    Computes relu(x@w1+b1)@w2+b2, optionally + residual(x) + LayerNorm."""
    G, M, F0 = x.shape
    F1 = w1.shape[-1]
    F2 = w2.shape[-1]

    f0_p = _round_up(F0, 8)
    if f0_p != F0:
        x = jnp.pad(x, ((0, 0), (0, 0), (0, f0_p - F0)))
        w1 = jnp.pad(w1, ((0, 0), (0, f0_p - F0), (0, 0)))
        F0 = f0_p

    Mp, tm = _tile_rows(M, tm_max)
    x = _pad_rows(x, Mp)

    out = pl.pallas_call(
        functools.partial(_group_ffn2_kernel, res_ln=res_ln),
        out_shape=jax.ShapeDtypeStruct((G, Mp, F2), jnp.float32),
        grid_spec=pltpu.PrefetchScalarGridSpec(
            num_scalar_prefetch=0,
            grid=(G, Mp // tm),
            in_specs=[
                pl.BlockSpec((1, tm, F0), lambda g, i: (g, i, 0)),
                pl.BlockSpec((1, F0, F1), lambda g, i: (g, 0, 0)),
                pl.BlockSpec((1, 1, F1), lambda g, i: (g, 0, 0)),
                pl.BlockSpec((1, F1, F2), lambda g, i: (g, 0, 0)),
                pl.BlockSpec((1, 1, F2), lambda g, i: (g, 0, 0)),
            ],
            out_specs=pl.BlockSpec((1, tm, F2), lambda g, i: (g, i, 0)),
        ),
        compiler_params=pltpu.CompilerParams(
            dimension_semantics=("parallel", "parallel")),
    )(x, w1, b1.reshape(G, 1, F1), w2, b2.reshape(G, 1, F2))
    return out[:, :M, :]


def linear_nd(x, w, b, *, relu=False, residual=None):
    """Single-problem (G=1) linear on a [..., Fin] tensor."""
    lead = x.shape[:-1]
    fout = w.shape[-1]
    res = residual.reshape(1, -1, fout) if residual is not None else None
    y = group_linear(x.reshape(1, -1, x.shape[-1]), w[None], b[None],
                     relu=relu, residual=res)
    return y.reshape(lead + (fout,))


def ffn2_nd(x, w1, b1, w2, b2, *, res_ln=False):
    """Single-problem (G=1) two-layer MLP on a [..., F0] tensor."""
    lead = x.shape[:-1]
    y = group_ffn2(x.reshape(1, -1, x.shape[-1]),
                   w1[None], b1[None], w2[None], b2[None], res_ln=res_ln)
    return y.reshape(lead + (w2.shape[-1],))


# ----------------------------------------------------------------------------
# parameter init (mimics nn.Linear: U(-1/sqrt(fan_in), 1/sqrt(fan_in)))
# ----------------------------------------------------------------------------
def _linear_init(key, fan_in, fan_out):
    kw, kb = jax.random.split(key)
    bound = 1.0 / math.sqrt(fan_in)
    w = jax.random.uniform(kw, (fan_in, fan_out), jnp.float32, -bound, bound)
    b = jax.random.uniform(kb, (fan_out,), jnp.float32, -bound, bound)
    return w, b


def init_params(key, infea, outfea, L, T1, T2):
    F = outfea
    keys = iter(jax.random.split(key, 256))

    def lin(fi, fo):
        return _linear_init(next(keys), fi, fo)

    p = {}
    # start embeddings (stacked: [low, high])
    w1l, b1l = lin(infea, F); w2l, b2l = lin(F, F)
    w1h, b1h = lin(infea, F); w2h, b2h = lin(F, F)
    p["start_emb"] = dict(w1=jnp.stack([w1l, w1h]), b1=jnp.stack([b1l, b1h]),
                          w2=jnp.stack([w2l, w2h]), b2=jnp.stack([b2l, b2h]))
    # temporal embedding FeedForward([55, F, F])
    w1, b1 = lin(55, F); w2, b2 = lin(F, F)
    p["te"] = dict(w1=w1, b1=b1, w2=w2, b2=b2)

    # encoder layers
    p["enc"] = []
    for _ in range(L):
        layer = {}
        # temporal attention (qfc|kfc|vfc fused along output axis)
        wq, bq = lin(F, F); wk, bk = lin(F, F); wv, bv = lin(F, F)
        wo, bo = lin(F, F)
        fw1, fb1 = lin(F, F); fw2, fb2 = lin(F, F)
        layer["tatt"] = dict(wqkv=jnp.concatenate([wq, wk, wv], axis=1),
                             bqkv=jnp.concatenate([bq, bk, bv]),
                             wo=wo, bo=bo, fw1=fw1, fb1=fb1, fw2=fw2, fb2=fb2)
        # temporal conv net: Conv2d(F, F, (1,2)) as a (2F -> F) linear
        wc, bc = lin(2 * F, F)
        layer["tcn"] = dict(w=wc, b=bc)

        # sparse spatial attention (ssal, ssah) stacked on a group axis
        def ssa_params():
            wq, bq = lin(F, F); wk, bk = lin(F, F); wv, bv = lin(F, F)
            wo, bo = lin(F, F)
            fw1, fb1 = lin(F, F); fw2, fb2 = lin(F, F)
            return dict(wqkv=jnp.concatenate([wq, wk, wv], axis=1),
                        bqkv=jnp.concatenate([bq, bk, bv]),
                        wo=wo, bo=bo, fw1=fw1, fb1=fb1, fw2=fw2, fb2=fb2)
        sl, sh = ssa_params(), ssa_params()
        layer["ssa"] = {k: jnp.stack([sl[k], sh[k]]) for k in sl}
        p["enc"].append(layer)

    # pre_l / pre_h : Conv2d(T1, T2, (1,1)) == linear over the time axis
    wpl, bpl = lin(T1, T2); wph, bph = lin(T1, T2)
    p["pre"] = dict(w=jnp.stack([wpl, wph]), b=jnp.stack([bpl, bph]))

    # adaptive fusion (klfc / vlfc are unused in forward, so not created)
    wq, bq = lin(F, F)
    wkh, bkh = lin(F, F); wvh, bvh = lin(F, F)
    wo, bo = lin(F, F)
    fw1, fb1 = lin(F, F); fw2, fb2 = lin(F, F)
    p["fusion"] = dict(wq=wq, bq=bq,
                       wkv=jnp.concatenate([wkh, wvh], axis=1),
                       bkv=jnp.concatenate([bkh, bvh]),
                       wo=wo, bo=bo, fw1=fw1, fb1=fb1, fw2=fw2, fb2=fb2)
    return p


# ----------------------------------------------------------------------------
# model blocks
# ----------------------------------------------------------------------------
def temporal_attention(prm, x, te, d):
    B, T, N, F = x.shape
    x = x + te                                                 # [B,T,N,F]
    qkv = linear_nd(x, prm["wqkv"], prm["bqkv"])               # fused Q|K|V
    q, k, v = jnp.split(qkv, 3, axis=-1)
    q = q.transpose(0, 2, 1, 3)                                # [B,N,T,F]
    k = k.transpose(0, 2, 3, 1)                                # [B,N,F,T]
    v = v.transpose(0, 2, 1, 3)                                # [B,N,T,F]
    attn = jnp.matmul(q, k) / (d ** 0.5)                       # [B,N,T,T]
    mask = jnp.tril(jnp.ones((T, T), dtype=bool))
    attn = jnp.where(mask, attn, NEG_MASK)
    attn = jax.nn.softmax(attn, axis=-1)
    val = jnp.matmul(attn, v).transpose(0, 2, 1, 3)            # [B,T,N,F]
    # ofc + residual + LayerNorm fused into one kernel
    val = linear_nd(val, prm["wo"], prm["bo"], residual=x)
    return ffn2_nd(val, prm["fw1"], prm["fb1"], prm["fw2"], prm["fb2"],
                   res_ln=True)


def temporal_conv(prm, x):
    # causal dilated-1 conv (1,2) + ReLU   (dropout omitted: eval semantics)
    x_prev = jnp.pad(x, ((0, 0), (1, 0), (0, 0), (0, 0)))[:, :-1]
    xin = jnp.concatenate([x_prev, x], axis=-1)                # [B,T,N,2F]
    return linear_nd(xin, prm["w"], prm["b"], relu=True)


def sparse_spatial_attention_pair(prm, xl, xh, adjgat, d):
    """Runs ssal(xl) and ssah(xh) fused on a G=2 group axis."""
    B, T, N, F = xl.shape
    M = B * T * N
    x_ = jnp.stack([xl, xh]) + adjgat                          # [2,B,T,N,F]
    x_flat = x_.reshape(2, M, F)
    qkv = group_linear(x_flat, prm["wqkv"], prm["bqkv"]).reshape(2, B, T, N, 3 * F)
    Q, K, V = jnp.split(qkv, 3, axis=-1)
    attn = jnp.matmul(Q, jnp.swapaxes(K, -2, -1)) / (d ** 0.5)  # [2,B,T,N,N]
    attn = jax.nn.softmax(attn, axis=-1)
    av = jnp.matmul(attn, V)                                    # [2,B,T,N,F]
    # TODO(synk): argmax row-gather kept in plain JAX.
    cp = jnp.argmax(attn, axis=-2)                              # [2,B,T,N]
    val = jnp.take_along_axis(av, jnp.broadcast_to(cp[..., None], av.shape),
                              axis=-2)                          # [2,B,T,N,F]
    val = group_linear(val.reshape(2, M, F), prm["wo"], prm["bo"],
                       residual=x_flat)                         # ofc + res + LN
    out = group_ffn2(val, prm["fw1"], prm["fb1"], prm["fw2"], prm["fb2"],
                     res_ln=False).reshape(2, B, T, N, F)
    return out[0], out[1]


def adaptive_fusion(prm, xl, xh, te, d):
    B, T, N, F = xl.shape
    xl = xl + te          # note: PyTorch does this in place -> leaks into hat_y_l
    xh = xh + te
    q = linear_nd(xl, prm["wq"], prm["bq"]).transpose(0, 2, 1, 3)   # [B,N,T,F]
    kv = linear_nd(xh, prm["wkv"], prm["bkv"], relu=True)           # Kh|Vh fused
    keyh, valueh = jnp.split(kv, 2, axis=-1)
    keyh = keyh.transpose(0, 2, 3, 1)                               # [B,N,F,T]
    valueh = valueh.transpose(0, 2, 1, 3)                           # [B,N,T,F]
    attn = jnp.matmul(q, keyh)                                      # [B,N,T,T]
    mask = jnp.tril(jnp.ones((T, T), dtype=bool))
    attn = jnp.where(mask, attn, NEG_MASK)
    attn = attn / (d ** 0.5)
    attn = jax.nn.softmax(attn, axis=-1)
    val = jnp.matmul(attn, valueh).transpose(0, 2, 1, 3)            # [B,T,N,F]
    val = linear_nd(val, prm["wo"], prm["bo"], residual=xl)
    out = ffn2_nd(val, prm["fw1"], prm["fb1"], prm["fw2"], prm["fb2"],
                  res_ln=True)
    return out, xl


def stockformer_backbone(params, xl, xh, te, bonus, indicator, adjgat, *, d, T1):
    B, T, N = xl.shape
    F = params["start_emb"]["w2"].shape[-1]

    xl4 = jnp.concatenate([xl[..., None], indicator[..., None], bonus], axis=-1)
    xh4 = jnp.concatenate([xh[..., None], indicator[..., None], bonus], axis=-1)
    infea = xl4.shape[-1]

    # start embeddings: both branches in ONE fused ffn2 call (G=2)
    se = params["start_emb"]
    emb = group_ffn2(jnp.stack([xl4, xh4]).reshape(2, B * T * N, infea),
                     se["w1"], se["b1"], se["w2"], se["b2"])
    x_l = emb[0].reshape(B, T, N, F)
    x_h = emb[1].reshape(B, T, N, F)

    # temporal embedding
    dow = jax.nn.one_hot(te[..., 0] % 5, 5, dtype=jnp.float32)
    tod = jax.nn.one_hot(te[..., 1] % 50, 50, dtype=jnp.float32)
    te_feat = jnp.concatenate([dow, tod], axis=-1)[:, :, None, :]   # [B,Tt,1,55]
    tp = params["te"]
    TE = ffn2_nd(te_feat, tp["w1"], tp["b1"], tp["w2"], tp["b2"])   # [B,Tt,1,F]

    te1 = TE[:, :T1]
    for layer in params["enc"]:
        x_l = temporal_attention(layer["tatt"], x_l, te1, d)
        x_h = temporal_conv(layer["tcn"], x_h)
        sl, sh = sparse_spatial_attention_pair(layer["ssa"], x_l, x_h, adjgat, d)
        x_l = sl + x_l
        x_h = sh + x_h

    # pre_l / pre_h: 1x1 conv over time == linear on the T axis, fused G=2
    pre = params["pre"]
    T2 = pre["w"].shape[-1]
    xs = jnp.stack([x_l, x_h]).transpose(0, 1, 3, 4, 2).reshape(2, B * N * F, T1)
    ys = group_linear(xs, pre["w"], pre["b"])
    ys = ys.reshape(2, B, N, F, T2).transpose(0, 1, 4, 2, 3)        # [2,B,T2,N,F]
    hat_y_l, hat_y_h = ys[0], ys[1]

    te2 = TE[:, T1:]
    hat_y, hat_y_l = adaptive_fusion(params["fusion"], hat_y_l, hat_y_h, te2, d)
    return hat_y, hat_y_l


# ----------------------------------------------------------------------------
# kernel self-check (against plain JAX at high precision)
# ----------------------------------------------------------------------------
def _check_kernels(key):
    ks = jax.random.split(key, 9)
    G, M, Fi, Fo = 2, 100, 32, 48         # M not a multiple of 8 -> exercises padding
    hp = jax.lax.Precision.HIGHEST
    x = jax.random.normal(ks[0], (G, M, Fi), jnp.float32)
    w = jax.random.normal(ks[1], (G, Fi, Fo), jnp.float32) * 0.1
    b = jax.random.normal(ks[2], (G, Fo), jnp.float32) * 0.1
    r = jax.random.normal(ks[3], (G, M, Fo), jnp.float32)

    y = group_linear(x, w, b, relu=True)
    y_ref = jnp.maximum(jnp.einsum("gmf,gfo->gmo", x, w, precision=hp)
                        + b[:, None, :], 0.0)
    assert float(jnp.max(jnp.abs(y - y_ref))) < 5e-4

    yl = group_linear(x, w, b, residual=r)
    t = jnp.einsum("gmf,gfo->gmo", x, w, precision=hp) + b[:, None, :] + r
    mu = t.mean(-1, keepdims=True)
    var = ((t - mu) ** 2).mean(-1, keepdims=True)
    assert float(jnp.max(jnp.abs(yl - (t - mu) / jnp.sqrt(var + LN_EPS)))) < 5e-4

    w1 = jax.random.normal(ks[4], (G, Fi, Fi), jnp.float32) * 0.1
    b1 = jax.random.normal(ks[5], (G, Fi), jnp.float32) * 0.1
    w2 = jax.random.normal(ks[6], (G, Fi, Fi), jnp.float32) * 0.1
    b2 = jax.random.normal(ks[7], (G, Fi), jnp.float32) * 0.1
    z = group_ffn2(x, w1, b1, w2, b2, res_ln=True)
    h = jnp.maximum(jnp.einsum("gmf,gfk->gmk", x, w1, precision=hp)
                    + b1[:, None, :], 0.0)
    t2 = jnp.einsum("gmk,gko->gmo", h, w2, precision=hp) + b2[:, None, :] + x
    mu2 = t2.mean(-1, keepdims=True)
    v2 = ((t2 - mu2) ** 2).mean(-1, keepdims=True)
    assert float(jnp.max(jnp.abs(z - (t2 - mu2) / jnp.sqrt(v2 + LN_EPS)))) < 5e-4


# ----------------------------------------------------------------------------
# main
# ----------------------------------------------------------------------------
if __name__ == "__main__":
    B, N = 2, 16
    T1, T2 = 8, 4
    D2 = 4                          # bonus feature dim
    infea = 2 + D2                  # [x, indicator, bonus]
    outfea = 32
    L = 1
    h, d, s = 1, 32, 4              # h=1 matches the module's mask broadcasting

    key = jax.random.PRNGKey(0)
    kp, kx, kh, kb, ki, ka, kt, kc = jax.random.split(key, 8)

    params = init_params(kp, infea, outfea, L, T1, T2)
    xl = jax.random.normal(kx, (B, T1, N), jnp.float32)
    xh = jax.random.normal(kh, (B, T1, N), jnp.float32)
    bonus = jax.random.normal(kb, (B, T1, N, D2), jnp.float32)
    indicator = jax.random.normal(ki, (B, T1, N), jnp.float32)
    adjgat = jax.random.normal(ka, (N, outfea), jnp.float32)
    te = jax.random.randint(kt, (B, T1 + T2, 2), 0, 50)

    _check_kernels(kc)

    fwd = jax.jit(functools.partial(stockformer_backbone, d=d, T1=T1))
    hat_y, hat_y_l = fwd(params, xl, xh, te, bonus, indicator, adjgat)
    hat_y, hat_y_l = jax.block_until_ready((hat_y, hat_y_l))

    assert hat_y.shape == (B, T2, N, outfea)
    assert hat_y_l.shape == (B, T2, N, outfea)
    assert bool(jnp.all(jnp.isfinite(hat_y)))
    assert bool(jnp.all(jnp.isfinite(hat_y_l)))
    print("KERNEL_OK")
</pallas_src>

<mosaic_0001>
module attributes {stable_mosaic.version = 11 : i64} {
  func.func @_group_linear_kernel(%arg0: i32, %arg1: i32, %arg2: memref<1x104x32xf32, #tpu.memory_space<vmem>>, %arg3: memref<1x32x48xf32, #tpu.memory_space<vmem>>, %arg4: memref<1x1x48xf32, #tpu.memory_space<vmem>>, %arg5: memref<1x104x48xf32, #tpu.memory_space<vmem>>) attributes {dimension_semantics = [#tpu.dimension_semantics<parallel>, #tpu.dimension_semantics<parallel>], iteration_bounds = array<i64: 2, 1>, scalar_prefetch = 0 : i64, scratch_operands = 0 : i64, tpu.core_type = #tpu.core_type<tc>, window_params = [{transform_indices = @transform_0, window_bounds = array<i64: 1, 104, 32>}, {transform_indices = @transform_1, window_bounds = array<i64: 1, 32, 48>}, {transform_indices = @transform_2, window_bounds = array<i64: 1, 1, 48>}, {transform_indices = @transform_3, window_bounds = array<i64: 1, 104, 48>}]} {
    %c0 = arith.constant 0 : index
    %c0_0 = arith.constant 0 : index
    %c0_1 = arith.constant 0 : index
    %0 = vector.load %arg2[%c0, %c0_0, %c0_1] : memref<1x104x32xf32, #tpu.memory_space<vmem>>, vector<1x104x32xf32>
    %1 = vector.shape_cast %0 : vector<1x104x32xf32> to vector<104x32xf32>
    %c0_2 = arith.constant 0 : index
    %c0_3 = arith.constant 0 : index
    %c0_4 = arith.constant 0 : index
    %2 = vector.load %arg3[%c0_2, %c0_3, %c0_4] : memref<1x32x48xf32, #tpu.memory_space<vmem>>, vector<1x32x48xf32>
    %3 = vector.shape_cast %2 : vector<1x32x48xf32> to vector<32x48xf32>
    %cst = arith.constant dense<0.000000e+00> : vector<104x48xf32>
    %4 = tpu.matmul %1, %3, %cst {dimension_numbers = #tpu.dot_dimension_numbers<[1], [0], [0], [1], [0, 0, 1, 1], [], []>} : vector<104x32xf32>, vector<32x48xf32>, vector<104x48xf32> -> vector<104x48xf32>
    %c0_5 = arith.constant 0 : index
    %c0_6 = arith.constant 0 : index
    %c0_7 = arith.constant 0 : index
    %5 = vector.load %arg4[%c0_5, %c0_6, %c0_7] : memref<1x1x48xf32, #tpu.memory_space<vmem>>, vector<1x1x48xf32>
    %6 = vector.shape_cast %5 : vector<1x1x48xf32> to vector<1x48xf32>
    %7 = vector.broadcast %6 : vector<1x48xf32> to vector<104x48xf32>
    %8 = arith.addf %4, %7 : vector<104x48xf32>
    %cst_8 = arith.constant 0.000000e+00 : f32
    %9 = vector.broadcast %cst_8 : f32 to vector<104x48xf32>
    %10 = arith.maximumf %8, %9 : vector<104x48xf32>
    %c0_9 = arith.constant 0 : index
    %c0_10 = arith.constant 0 : index
    %c0_11 = arith.constant 0 : index
    %11 = vector.load %arg5[%c0_9, %c0_10, %c0_11] : memref<1x104x48xf32, #tpu.memory_space<vmem>>, vector<1x104x48xf32>
    %12 = vector.shape_cast %11 : vector<1x104x48xf32> to vector<104x48xf32>
    %13 = vector.shape_cast %10 : vector<104x48xf32> to vector<1x104x48xf32>
    tpu.vector_store %arg5[%c0_9, %c0_10, %c0_11], %13 {strides = array<i32>} : memref<1x104x48xf32, #tpu.memory_space<vmem>>, vector<1x104x48xf32>,
    return
  }
  func.func @transform_0(%arg0: i32, %arg1: i32) -> (i32, i32, i32) {
    %c0_i32 = arith.constant 0 : i32
    %c0_i32_0 = arith.constant 0 : i32
    return %arg0, %arg1, %c0_i32 : i32, i32, i32
  }
  func.func @transform_1(%arg0: i32, %arg1: i32) -> (i32, i32, i32) {
    %c0_i32 = arith.constant 0 : i32
    %c0_i32_0 = arith.constant 0 : i32
    %c0_i32_1 = arith.constant 0 : i32
    return %arg0, %c0_i32, %c0_i32_0 : i32, i32, i32
  }
  func.func @transform_2(%arg0: i32, %arg1: i32) -> (i32, i32, i32) {
    %c0_i32 = arith.constant 0 : i32
    %c0_i32_0 = arith.constant 0 : i32
    %c0_i32_1 = arith.constant 0 : i32
    return %arg0, %c0_i32, %c0_i32_0 : i32, i32, i32
  }
  func.func @transform_3(%arg0: i32, %arg1: i32) -> (i32, i32, i32) {
    %c0_i32 = arith.constant 0 : i32
    %c0_i32_0 = arith.constant 0 : i32
    return %arg0, %arg1, %c0_i32 : i32, i32, i32
  }
}

</mosaic_0001>

<llo_original>
// kernel: tpu_custom_call.1
$region0: #{tpu_custom_call.1}
  #allocation0 [shape = 'u32[]', space=smem, size = 0x4, offset = 0x4, fixed_abs, tag = 'smem constant byte address 0x4 - core index']
  #allocation1 [shape = 'u32[144,128]{1,0:T(1,128)}', space=vmem, size = 0x12000, scoped, tag = 'internal scratch']
  %s0 = inlined_call_operand.vmem [shape: f32[2,104,32], index: 0, kind: input, shape index: {}]
  %s1 = inlined_call_operand.vmem [shape: f32[2,32,48], index: 1, kind: input, shape index: {}]
  %s2 = inlined_call_operand.vmem [shape: f32[2,1,48], index: 2, kind: input, shape index: {}]
  %s3 = inlined_call_operand.vmem [shape: f32[2,104,48], index: 3, kind: output, shape index: {}]
  %s4 = sld [smem:[#allocation0]]
  $region45: #{tpu_custom_call.1} parent=0
    _
  %s6 = ssub.s32 1, %s4
  %s7 = scalar_select 0, %s6, %s4
  loop: start=0, step=1, limit=4
  $region2: #{tpu_custom_call.1} parent=0 // loop_pre_header
    _
  $region3: #{tpu_custom_call.1} parent=0 // loop_header
    %s9 = sphi 0, %s13
    %p10 = scmp.ge.s32.totalorder %s9, 4
    %s16 = sphi 0, %s28
    %s17 = sphi 0, %s24
    %s18 = sphi 0, %s16
    %s19 = sphi 0, %s17
    %s20 = sphi 0, %s18
    %s21 = sphi 0, %s19
    %s33 = sphi 0, %s35
    %s36 = sphi 0, %s33
    %s37 = sphi 0, %s36
    %s53 = sphi 0, %s37
    %s59 = sphi 0, %s61
    %s62 = sphi 0, %s59
    %s63 = sphi 0, %s62
    %s79 = sphi 0, %s63
    %s85 = sphi 0, %s87
    %s88 = sphi 0, %s85
    %s89 = sphi 0, %s88
    %s105 = sphi 0, %s89
    %s113 = sphi 0, %s115
    %s116 = sphi 0, %s113
    %s117 = sphi 0, %s116
    %s133 = sphi 0, %s117
  $region4: #{tpu_custom_call.1} parent=0 // loop_header_branch
    %12 = sbr.rel (%p10) target = $region8
  $region5: #{tpu_custom_call.1} parent=0 // loop_body
    %s14 = ssub.s32 %s9, 1
    %s15 = ssub.s32 %s9, 2
    %s22 = sadd.s32 1, %s17
    %p23 = scmp.ge.s32.totalorder %s22, 1
    %s24 = scalar_select %p23, 0, %s22
    %s25 = sadd.s32 1, %s16
    %s26 = scalar_select %p23, %s25, %s16
    %p27 = scmp.ge.s32.totalorder %s26, 2
    %s28 = scalar_select %p27, 0, %s26
    %s29 = ssub.s32 %s16, %s28
    %s30 = ssub.s32 %s17, %s24
    %s31 = sor.u32 %s29, %s30
    %p32 = scmp.eq.s32.totalorder %s31, 0
    %s34 = sadd.s32 %s33, 1
    %s35 = scalar_select %p32, %s33, %s34
    %p38 = pneg %p32
    %p39 = scmp.eq.s32.totalorder %s9, 1
    %p40 = por %p38, %p39
    %p41 = scmp.ne.s32.totalorder %s33, %s36
    %p42 = scmp.eq.s32.totalorder %s9, 0
    %p43 = por %p41, %p42
    %p44 = scmp.ne.s32.totalorder %s33, %s36
    %p45 = scmp.eq.s32.totalorder %s14, 1
    %p46 = por %p44, %p45
    %p47 = scmp.ne.s32.totalorder %s36, %s37
    %p48 = scmp.eq.s32.totalorder %s14, 0
    %p49 = por %p47, %p48
    %p50 = scmp.ne.s32.totalorder %s36, %s37
    %p51 = scmp.eq.s32.totalorder %s15, 1
    %p52 = por %p50, %p51
    %p54 = scmp.ne.s32.totalorder %s37, %s53
    %p55 = scmp.eq.s32.totalorder %s15, 0
    %p56 = por %p54, %p55
    %s57 = ssub.s32 %s16, %s28
    %p58 = scmp.eq.s32.totalorder %s57, 0
    %s60 = sadd.s32 %s59, 1
    %s61 = scalar_select %p58, %s59, %s60
    %p64 = pneg %p58
    %p65 = scmp.eq.s32.totalorder %s9, 1
    %p66 = por %p64, %p65
    %p67 = scmp.ne.s32.totalorder %s59, %s62
    %p68 = scmp.eq.s32.totalorder %s9, 0
    %p69 = por %p67, %p68
    %p70 = scmp.ne.s32.totalorder %s59, %s62
    %p71 = scmp.eq.s32.totalorder %s14, 1
    %p72 = por %p70, %p71
    %p73 = scmp.ne.s32.totalorder %s62, %s63
    %p74 = scmp.eq.s32.totalorder %s14, 0
    %p75 = por %p73, %p74
    %p76 = scmp.ne.s32.totalorder %s62, %s63
    %p77 = scmp.eq.s32.totalorder %s15, 1
    %p78 = por %p76, %p77
    %p80 = scmp.ne.s32.totalorder %s63, %s79
    %p81 = scmp.eq.s32.totalorder %s15, 0
    %p82 = por %p80, %p81
    %s83 = ssub.s32 %s16, %s28
    %p84 = scmp.eq.s32.totalorder %s83, 0
    %s86 = sadd.s32 %s85, 1
    %s87 = scalar_select %p84, %s85, %s86
    %p90 = pneg %p84
    %p91 = scmp.eq.s32.totalorder %s9, 1
    %p92 = por %p90, %p91
    %p93 = scmp.ne.s32.totalorder %s85, %s88
    %p94 = scmp.eq.s32.totalorder %s9, 0
    %p95 = por %p93, %p94
    %p96 = scmp.ne.s32.totalorder %s85, %s88
    %p97 = scmp.eq.s32.totalorder %s14, 1
    %p98 = por %p96, %p97
    %p99 = scmp.ne.s32.totalorder %s88, %s89
    %p100 = scmp.eq.s32.totalorder %s14, 0
    %p101 = por %p99, %p100
    %p102 = scmp.ne.s32.totalorder %s88, %s89
    %p103 = scmp.eq.s32.totalorder %s15, 1
    %p104 = por %p102, %p103
    %p106 = scmp.ne.s32.totalorder %s89, %s105
    %p107 = scmp.eq.s32.totalorder %s15, 0
    %p108 = por %p106, %p107
    %s109 = ssub.s32 %s16, %s28
    %s110 = ssub.s32 %s17, %s24
    %s111 = sor.u32 %s109, %s110
    %p112 = scmp.eq.s32.totalorder %s111, 0
    %s114 = sadd.s32 %s113, 1
    %s115 = scalar_select %p112, %s113, %s114
    %p118 = pneg %p112
    %p119 = scmp.eq.s32.totalorder %s9, 1
    %p120 = por %p118, %p119
    %p121 = scmp.ne.s32.totalorder %s113, %s116
    %p122 = scmp.eq.s32.totalorder %s9, 0
    %p123 = por %p121, %p122
    %p124 = scmp.ne.s32.totalorder %s113, %s116
    %p125 = scmp.eq.s32.totalorder %s14, 1
    %p126 = por %p124, %p125
    %p127 = scmp.ne.s32.totalorder %s116, %s117
    %p128 = scmp.eq.s32.totalorder %s14, 0
    %p129 = por %p127, %p128
    %p130 = scmp.ne.s32.totalorder %s116, %s117
    %p131 = scmp.eq.s32.totalorder %s15, 1
    %p132 = por %p130, %p131
    %p134 = scmp.ne.s32.totalorder %s117, %s133
    %p135 = scmp.eq.s32.totalorder %s15, 0
    %p136 = por %p134, %p135
    %p137 = scmp.le.s32.totalorder 1, %s9
    %p138 = scmp.lt.s32.totalorder %s9, 3
    %p139 = pnand %p137, %p138
    %p140 = pneg %p139
    // Predicated region
    $region9: #{tpu_custom_call.1} parent=5 // pred_check
      _
    $region10: #{tpu_custom_call.1} parent=5 // pred_check_branch
      %142 = sbr.rel (%p139) target = $region12
    $region11: #{tpu_custom_call.1} parent=5 // pred_region
      %s143 = ssub.s32 %s9, 1
    $region12: #{tpu_custom_call.1} parent=5 // pred_fallthru
      _
    %p144 = scmp.lt.s32.totalorder %s9, 2
    // Predicated region
    $region13: #{tpu_custom_call.1} parent=5 // pred_check
      %p145 = pneg %p144
    $region14: #{tpu_custom_call.1} parent=5 // pred_check_branch
      %147 = sbr.rel (%p145) target = $region16
    $region15: #{tpu_custom_call.1} parent=5 // pred_region
      // Predicated region
      $region17: #{tpu_custom_call.1} parent=15 // pred_check
        %p148 = pneg %p43
      $region18: #{tpu_custom_call.1} parent=15 // pred_check_branch
        %150 = sbr.rel (%p148) target = $region20
      $region19: #{tpu_custom_call.1} parent=15 // pred_region
        %s151 = smul.u32 13, %s17
        %p152 = scmp.lt.s32.totalorder %s16, 1
        %s153 = scalar_select %p152, %s16, 1
        %p154 = scmp.lt.s32.totalorder %s151, 12
        %s155 = scalar_select %p154, %s151, 12
        %s156 = smul.addr %s153, 13
        %s157 = sadd.s32 %s155, %s156
        %s158 = smul.addr %s157, 8
        %s159 = scalar_lea.vmem %s0, %s158
        %s160 = smul.u32 13, %s17
      $region20: #{tpu_custom_call.1} parent=15 // pred_fallthru
        _
      // Predicated region
      $region21: #{tpu_custom_call.1} parent=15 // pred_check
        %p161 = pneg %p69
      $region22: #{tpu_custom_call.1} parent=15 // pred_check_branch
        %163 = sbr.rel (%p161) target = $region24
      $region23: #{tpu_custom_call.1} parent=15 // pred_region
        %p164 = scmp.lt.s32.totalorder %s16, 1
        %s165 = scalar_select %p164, %s16, 1
        %s166 = smul.addr %s165, 4
        %s167 = smul.addr %s166, 8
        %s168 = scalar_lea.vmem %s1, %s167
      $region24: #{tpu_custom_call.1} parent=15 // pred_fallthru
        _
      // Predicated region
      $region25: #{tpu_custom_call.1} parent=15 // pred_check
        %p169 = pneg %p95
      $region26: #{tpu_custom_call.1} parent=15 // pred_check_branch
        %171 = sbr.rel (%p169) target = $region28
      $region27: #{tpu_custom_call.1} parent=15 // pred_region
        %p172 = scmp.lt.s32.totalorder %s16, 1
        %s173 = scalar_select %p172, %s16, 1
        %s174 = scalar_lea.vmem %s2, %s173
      $region28: #{tpu_custom_call.1} parent=15 // pred_fallthru
        _
    $region16: #{tpu_custom_call.1} parent=5 // pred_fallthru
      _
    %p175 = scmp.le.s32.totalorder 1, %s9
    %p176 = scmp.lt.s32.totalorder %s9, 3
    %p177 = pnand %p175, %p176
    %p178 = pneg %p177
    // Predicated region
    $region29: #{tpu_custom_call.1} parent=5 // pred_check
      _
    $region30: #{tpu_custom_call.1} parent=5 // pred_check_branch
      %180 = sbr.rel (%p177) target = $region32
    $region31: #{tpu_custom_call.1} parent=5 // pred_region
      %s181 = ssub.s32 %s9, 1
      %s182 = smul.u32 13, %s19
      %p183 = scmp.lt.s32.totalorder %s18, 1
      %s184 = scalar_select %p183, %s18, 1
      %p185 = scmp.lt.s32.totalorder %s182, 12
      %s186 = scalar_select %p185, %s182, 12
      %s187 = smul.addr %s184, 13
      %s188 = sadd.s32 %s186, %s187
      %s189 = smul.addr %s188, 8
      %s190 = scalar_lea.vmem %s0, %s189
      %p191 = pneg %p49
      %p192 = pneg %p46
      %p193 = scmp.lt.s32.totalorder %s18, 1
      %s194 = scalar_select %p193, %s18, 1
      %s195 = smul.addr %s194, 4
      %s196 = smul.addr %s195, 8
      %s197 = scalar_lea.vmem %s1, %s196
      %p198 = pneg %p75
      %p199 = pneg %p72
      %p200 = scmp.lt.s32.totalorder %s18, 1
      %s201 = scalar_select %p200, %s18, 1
      %s202 = scalar_lea.vmem %s2, %s201
      %p203 = pneg %p101
      %p204 = pneg %p98
      %p205 = pneg %p129
      %p206 = pneg %p126
      %s207 = smul.u32 13, %s19
      %p208 = scmp.lt.s32.totalorder %s18, 1
      %s209 = scalar_select %p208, %s18, 1
      %p210 = scmp.lt.s32.totalorder %s207, 12
      %s211 = scalar_select %p210, %s207, 12
      %s212 = smul.addr %s209, 13
      %s213 = sadd.s32 %s211, %s212
      %s214 = smul.addr %s213, 8
      %s215 = scalar_lea.vmem %s3, %s214
      %s216 = smul.u32 13, %s19
      %p217 = scmp.lt.s32.totalorder %s18, 1
      %s218 = scalar_select %p217, %s18, 1
      %p219 = scmp.lt.s32.totalorder %s216, 12
      %s220 = scalar_select %p219, %s216, 12
      %s221 = smul.addr %s218, 13
      %s222 = sadd.s32 %s220, %s221
      %s223 = smul.addr %s222, 8
      %s224 = scalar_lea.vmem %s0, %s223
      %s225 = smul.u32 13, %s19
      %p226 = scmp.lt.s32.totalorder %s18, 1
      %s227 = scalar_select %p226, %s18, 1
      %s228 = smul.addr %s227, 4
      %s229 = smul.addr %s228, 8
      %s230 = scalar_lea.vmem %s1, %s229
      %p231 = scmp.lt.s32.totalorder %s18, 1
      %s232 = scalar_select %p231, %s18, 1
      %s233 = scalar_lea.vmem %s2, %s232
      %s234 = smul.u32 13, %s19
      %p235 = scmp.lt.s32.totalorder %s18, 1
      %s236 = scalar_select %p235, %s18, 1
      %p237 = scmp.lt.s32.totalorder %s234, 12
      %s238 = scalar_select %p237, %s234, 12
      %s239 = smul.addr %s236, 13
      %s240 = sadd.s32 %s238, %s239
      %s241 = smul.addr %s240, 8
      %s242 = scalar_lea.vmem %s3, %s241
      %s243 = smul.u32 13, %s19
      %v244 = vld [vmem:[%s224] sm:$0xff]
      %v245 = vld [vmem:[%s224 + $0x8] sm:$0xff]
      %v246 = vld [vmem:[%s224 + $0x10] sm:$0xff]
      %v247 = vld [vmem:[%s224 + $0x18] sm:$0xff]
      %v248 = vld [vmem:[%s224 + $0x20] sm:$0xff]
      %v249 = vld [vmem:[%s224 + $0x28] sm:$0xff]
      %v250 = vld [vmem:[%s224 + $0x30] sm:$0xff]
      %v251 = vld [vmem:[%s224 + $0x38] sm:$0xff]
      %v252 = vld [vmem:[%s224 + $0x40] sm:$0xff]
      %v253 = vld [vmem:[%s224 + $0x48] sm:$0xff]
      %v254 = vld [vmem:[%s224 + $0x50] sm:$0xff]
      %v255 = vld [vmem:[%s224 + $0x58] sm:$0xff]
      %v256 = vld [vmem:[%s224 + $0x60] sm:$0xff]
      %v257 = vld [vmem:[%s230] sm:$0xff]
      %v258 = vld [vmem:[%s230 + $0x8] sm:$0xff]
      %v259 = vld [vmem:[%s230 + $0x10] sm:$0xff]
      %v260 = vld [vmem:[%s230 + $0x18] sm:$0xff]
      %v261 = vld [vmem:[%s233] sm:$0x1]
      %v263 = vlaneseq
      %v264 = vshrl.u32 %v263, 7
      %v265 = vsub.s32 0, %v264
      %v266 = vrot.slane %v261, %v265
      %vm268 = vcmask 261120
      %v270 = vsel %vm268, %v244, 0
      %v273 = vsel %vm268, %v245, 0
      %v276 = vsel %vm268, %v246, 0
      %v279 = vsel %vm268, %v247, 0
      %v282 = vsel %vm268, %v248, 0
      %v285 = vsel %vm268, %v249, 0
      %v288 = vsel %vm268, %v250, 0
      %v291 = vsel %vm268, %v251, 0
      %v294 = vsel %vm268, %v252, 0
      %v297 = vsel %vm268, %v253, 0
      %v300 = vsel %vm268, %v254, 0
      %v303 = vsel %vm268, %v255, 0
      %v306 = vsel %vm268, %v256, 0
      %308 = vmatprep.subr.mxu0 0.0
      %309 = vmatpush1.msra.mxu0 0.0
      %310 = vmatprep.subr.mxu0 0.0
      %311 = vmatpush1.msra.mxu0 0.0
      %312 = vmatprep.subr.mxu0 0.0
      %313 = vmatpush1.msra.mxu0 0.0
      %314 = vmatprep.subr.mxu0 0.0
      %315 = vmatpush1.msra.mxu0 0.0
      %316 = vmatprep.subr.mxu0 0.0
      %317 = vmatpush1.msra.mxu0 0.0
      %318 = vmatprep.subr.mxu0 0.0
      %319 = vmatpush1.msra.mxu0 0.0
      %320 = vmatprep.subr.mxu0 0.0
      %321 = vmatpush1.msra.mxu0 0.0
      %322 = vmatprep.subr.mxu0 0.0
      %323 = vmatpush1.msra.mxu0 0.0
      %324 = vmatprep.subr.mxu0 0.0
      %325 = vmatpush1.msra.mxu0 0.0
      %326 = vmatprep.subr.mxu0 0.0
      %327 = vmatpush1.msra.mxu0 0.0
      %328 = vmatprep.subr.mxu0 0.0
      %329 = vmatpush1.msra.mxu0 0.0
      %330 = vmatprep.subr.mxu0 0.0
      %331 = vmatpush1.msra.mxu0 0.0
      %332 = vmatprep.subr.mxu0 0.0
      %333 = vmatpush1.msra.mxu0 %v260
      %334 = vmatprep.subr.mxu0 0.0
      %335 = vmatpush1.msra.mxu0 %v259
      %336 = vmatprep.subr.mxu0 0.0
      %337 = vmatpush1.msra.mxu0 %v258
      %338 = vmatprep.subr.mxu0 0.0
      %339 = vmatpush1.msra.mxu0 %v257
      %340 = vmatprep.subr.mxu0 0.0
      %341 = vmatpush2.msra.mxu0 0.0
      %342 = vmatprep.subr.mxu0 0.0
      %343 = vmatpush2.msra.mxu0 0.0
      %344 = vmatprep.subr.mxu0 0.0
      %345 = vmatpush2.msra.mxu0 0.0
      %346 = vmatprep.subr.mxu0 0.0
      %347 = vmatpush2.msra.mxu0 0.0
      %348 = vmatprep.subr.mxu0 0.0
      %349 = vmatpush2.msra.mxu0 0.0
      %350 = vmatprep.subr.mxu0 0.0
      %351 = vmatpush2.msra.mxu0 0.0
      %352 = vmatprep.subr.mxu0 0.0
      %353 = vmatpush2.msra.mxu0 0.0
      %354 = vmatprep.subr.mxu0 0.0
      %355 = vmatpush2.msra.mxu0 0.0
      %356 = vmatprep.subr.mxu0 0.0
      %357 = vmatpush2.msra.mxu0 0.0
      %358 = vmatprep.subr.mxu0 0.0
      %359 = vmatpush2.msra.mxu0 0.0
      %360 = vmatprep.subr.mxu0 0.0
      %361 = vmatpush2.msra.mxu0 0.0
      %362 = vmatprep.subr.mxu0 0.0
      %363 = vmatpush2.msra.mxu0 0.0
      %364 = vmatprep.subr.mxu0 0.0
      %365 = vmatpush2.msra.mxu0 0.0
      %366 = vmatprep.subr.mxu0 0.0
      %367 = vmatpush2.msra.mxu0 0.0
      %368 = vmatprep.subr.mxu0 0.0
      %369 = vmatpush2.msra.mxu0 0.0
      %370 = vmatprep.subr.mxu0 0.0
      %371 = vmatpush2.msra.mxu0 0.0
      %372 = vmatprep.mubr.f32.mxu0 0.0
      %373 = vmatmul.mubr.f32.gmra.mxu0 %v270
      %v374 = vpop.f32.mrf.mxu0
      %v375 = vadd.f32 %v266, %v374
      %v376 = vpop.f32.mrf.mxu0
      %377 = vmatprep.mubr.f32.mxu0 0.0
      %378 = vmatmul.mubr.f32.gmra.mxu0 %v273
      %v379 = vpop.f32.mrf.mxu0
      %v380 = vadd.f32 %v266, %v379
      %v381 = vpop.f32.mrf.mxu0
      %382 = vmatprep.mubr.f32.mxu0 0.0
      %383 = vmatmul.mubr.f32.gmra.mxu0 %v276
      %v384 = vpop.f32.mrf.mxu0
      %v385 = vadd.f32 %v266, %v384
      %v386 = vpop.f32.mrf.mxu0
      %387 = vmatprep.mubr.f32.mxu0 0.0
      %388 = vmatmul.mubr.f32.gmra.mxu0 %v279
      %v389 = vpop.f32.mrf.mxu0
      %v390 = vadd.f32 %v266, %v389
      %v391 = vpop.f32.mrf.mxu0
      %392 = vmatprep.mubr.f32.mxu0 0.0
      %393 = vmatmul.mubr.f32.gmra.mxu0 %v282
      %v394 = vpop.f32.mrf.mxu0
      %v395 = vadd.f32 %v266, %v394
      %v396 = vpop.f32.mrf.mxu0
      %397 = vmatprep.mubr.f32.mxu0 0.0
      %398 = vmatmul.mubr.f32.gmra.mxu0 %v285
      %v399 = vpop.f32.mrf.mxu0
      %v400 = vadd.f32 %v266, %v399
      %v401 = vpop.f32.mrf.mxu0
      %402 = vmatprep.mubr.f32.mxu0 0.0
      %403 = vmatmul.mubr.f32.gmra.mxu0 %v288
      %v404 = vpop.f32.mrf.mxu0
      %v405 = vadd.f32 %v266, %v404
      %v406 = vpop.f32.mrf.mxu0
      %407 = vmatprep.mubr.f32.mxu0 0.0
      %408 = vmatmul.mubr.f32.gmra.mxu0 %v291
      %v409 = vpop.f32.mrf.mxu0
      %v410 = vadd.f32 %v266, %v409
      %v411 = vpop.f32.mrf.mxu0
      %412 = vmatprep.mubr.f32.mxu0 0.0
      %413 = vmatmul.mubr.f32.gmra.mxu0 %v294
      %v414 = vpop.f32.mrf.mxu0
      %v415 = vadd.f32 %v266, %v414
      %v416 = vpop.f32.mrf.mxu0
      %417 = vmatprep.mubr.f32.mxu0 0.0
      %418 = vmatmul.mubr.f32.gmra.mxu0 %v297
      %v419 = vpop.f32.mrf.mxu0
      %v420 = vadd.f32 %v266, %v419
      %v421 = vpop.f32.mrf.mxu0
      %422 = vmatprep.mubr.f32.mxu0 0.0
      %423 = vmatmul.mubr.f32.gmra.mxu0 %v300
      %v424 = vpop.f32.mrf.mxu0
      %v425 = vadd.f32 %v266, %v424
      %v426 = vpop.f32.mrf.mxu0
      %427 = vmatprep.mubr.f32.mxu0 0.0
      %428 = vmatmul.mubr.f32.gmra.mxu0 %v303
      %v429 = vpop.f32.mrf.mxu0
      %v430 = vadd.f32 %v266, %v429
      %v431 = vpop.f32.mrf.mxu0
      %432 = vmatprep.mubr.f32.mxu0 0.0
      %433 = vmatmul.mubr.f32.gmra.mxu0 %v306
      %v434 = vpop.f32.mrf.mxu0
      %v435 = vadd.f32 %v266, %v434
      %v436 = vpop.f32.mrf.mxu0
      %437 = vdwg.mxu0
      %v438 = vmax.f32 %v375, 0.0
      %v439 = vmax.f32 %v380, 0.0
      %v440 = vmax.f32 %v385, 0.0
      %v441 = vmax.f32 %v390, 0.0
      %v442 = vmax.f32 %v395, 0.0
      %v443 = vmax.f32 %v400, 0.0
      %v444 = vmax.f32 %v405, 0.0
      %v445 = vmax.f32 %v410, 0.0
      %v446 = vmax.f32 %v415, 0.0
      %v447 = vmax.f32 %v420, 0.0
      %v448 = vmax.f32 %v425, 0.0
      %v449 = vmax.f32 %v430, 0.0
      %v450 = vmax.f32 %v435, 0.0
      %vm451 = vcmask 392192
      %452 = vst.msk [vmem:[%s242] sm:$0xff] %vm451, %v438
      %453 = vst.msk [vmem:[%s242 + $0x8] sm:$0xff] %vm451, %v439
      %454 = vst.msk [vmem:[%s242 + $0x10] sm:$0xff] %vm451, %v440
      %455 = vst.msk [vmem:[%s242 + $0x18] sm:$0xff] %vm451, %v441
      %456 = vst.msk [vmem:[%s242 + $0x20] sm:$0xff] %vm451, %v442
      %457 = vst.msk [vmem:[%s242 + $0x28] sm:$0xff] %vm451, %v443
      %458 = vst.msk [vmem:[%s242 + $0x30] sm:$0xff] %vm451, %v444
      %459 = vst.msk [vmem:[%s242 + $0x38] sm:$0xff] %vm451, %v445
      %460 = vst.msk [vmem:[%s242 + $0x40] sm:$0xff] %vm451, %v446
      %461 = vst.msk [vmem:[%s242 + $0x48] sm:$0xff] %vm451, %v447
      %462 = vst.msk [vmem:[%s242 + $0x50] sm:$0xff] %vm451, %v448
      %463 = vst.msk [vmem:[%s242 + $0x58] sm:$0xff] %vm451, %v449
      %464 = vst.msk [vmem:[%s242 + $0x60] sm:$0xff] %vm451, %v450
      %s465 = smul.u32 13, %s19
      %p466 = scmp.lt.s32.totalorder %s18, 1
      %s467 = scalar_select %p466, %s18, 1
      %p468 = scmp.lt.s32.totalorder %s465, 12
      %s469 = scalar_select %p468, %s465, 12
      %s470 = smul.addr %s467, 13
      %s471 = sadd.s32 %s469, %s470
      %s472 = smul.addr %s471, 8
      %s473 = scalar_lea.vmem %s3, %s472
      // Predicated region
      $region33: #{tpu_custom_call.1} parent=31 // pred_check
        %p474 = pneg %p126
      $region34: #{tpu_custom_call.1} parent=31 // pred_check_branch
        %476 = sbr.rel (%p474) target = $region36
      $region35: #{tpu_custom_call.1} parent=31 // pred_region
        %s477 = smul.u32 13, %s19
      $region36: #{tpu_custom_call.1} parent=31 // pred_fallthru
        _
    $region32: #{tpu_custom_call.1} parent=5 // pred_fallthru
      _
    %p478 = scmp.le.s32.totalorder 2, %s9
    // Predicated region
    $region37: #{tpu_custom_call.1} parent=5 // pred_check
      %p479 = pneg %p478
    $region38: #{tpu_custom_call.1} parent=5 // pred_check_branch
      %481 = sbr.rel (%p479) target = $region40
    $region39: #{tpu_custom_call.1} parent=5 // pred_region
      %s482 = ssub.s32 %s9, 2
      // Predicated region
      $region41: #{tpu_custom_call.1} parent=39 // pred_check
        %p483 = pneg %p132
      $region42: #{tpu_custom_call.1} parent=39 // pred_check_branch
        %485 = sbr.rel (%p483) target = $region44
      $region43: #{tpu_custom_call.1} parent=39 // pred_region
        %s486 = smul.u32 13, %s21
        %p487 = scmp.lt.s32.totalorder %s20, 1
        %s488 = scalar_select %p487, %s20, 1
        %p489 = scmp.lt.s32.totalorder %s486, 12
        %s490 = scalar_select %p489, %s486, 12
        %s491 = smul.addr %s488, 13
        %s492 = sadd.s32 %s490, %s491
        %s493 = smul.addr %s492, 8
        %s494 = scalar_lea.vmem %s3, %s493
      $region44: #{tpu_custom_call.1} parent=39 // pred_fallthru
        _
    $region40: #{tpu_custom_call.1} parent=5 // pred_fallthru
      _
  $region6: #{tpu_custom_call.1} parent=0 // loop_footer
    %s13 = sadd.s32 1, %s9
  $region7: #{tpu_custom_call.1} parent=0 // loop_footer_branch
    %8 = sbr.rel target = $region3
  $region8: #{tpu_custom_call.1} parent=0 // loop_exit
    _

</llo_original>
